<compile_context>
chip_gen: v5e
topology: v5e:2x2
jax: 0.10.0
libtpu: 0.0.40
codegen_flags: <defaults>
</compile_context>

<pallas_src>
import jax
import jax.numpy as jnp
from jax import lax
from jax.experimental import pallas as pl
from jax.experimental.pallas import tpu as pltpu


def _whiten_kernel(x_ref, w_ref, o_ref):
    # x_ref: (B, T)        full time axis of one channel (resident in VMEM,
    #                      re-used across all time tiles of that channel)
    # w_ref: (W_LEN, TN)   banded Toeplitz tap matrix of this channel
    # o_ref: (B, TN)       cropped, whitened output tile
    i = pl.program_id(1)
    tn = o_ref.shape[-1]
    w_len = w_ref.shape[0]

    x = x_ref[...]                                    # (B, T)
    # Global per-row detrend mean over the FULL time axis (not per tile).
    mean = jnp.mean(x, axis=-1, keepdims=True)        # (B, 1)

    # Aligned sliding window for this output tile: start is a multiple of TN
    # (itself a multiple of 128), so no lane-rotation fixup is needed.
    start = pl.multiple_of(i * tn, min(tn, 128))
    win = x_ref[:, pl.ds(start, w_len)] - mean        # (B, W_LEN)

    # Depthwise FIR as a single MXU matmul against the banded tap matrix.
    o_ref[...] = jnp.dot(
        win, w_ref[...], preferred_element_type=jnp.float32
    ).astype(o_ref.dtype)


def _pick_time_tile(t_out):
    # 256-wide output tiles keep the v6e/v7x MXU full; they also map fine onto
    # v5e's 128x128 MXU.  Fall back to a single full-extent tile (allowed by
    # BlockSpec) when the cropped length does not divide.
    for tn in (256, 128):
        if t_out % tn == 0:
            return tn
    return t_out


def preprocessor_forward(x, time_domain_filter, sample_rate, fduration):
    """x: (B, C, T) float32; time_domain_filter: (C, 1, K) float32."""
    B, C, T = x.shape
    K = time_domain_filter.shape[-1]
    assert K % 2 == 1, "whitening FIR must have an odd tap count"
    PAD = K // 2
    # TODO(synk): fduration=None (no corrupted-edge crop) is not supported here.
    # Note: CROP uses the same float expression as the PyTorch module; for
    # robustness it could be derived from integer sample counts.
    CROP = int((fduration / 2) * sample_rate)
    T_out = T - 2 * CROP
    assert T_out > 0
    OFF = CROP - PAD
    # Cropped output depends only on un-padded samples iff CROP >= PAD, which
    # holds for this module (K = int(fduration*sample_rate) - 1).
    assert OFF >= 0, (CROP, PAD)

    TN = _pick_time_tile(T_out)
    NI = T_out // TN
    W_LEN = TN + OFF + K - 1

    # Channel-major layout (C, B, T): only the tiny leading axes are permuted;
    # the time axis stays the contiguous minor (lane) dimension.
    x_cbt = jnp.transpose(x, (1, 0, 2)).astype(jnp.float32)

    # Banded Toeplitz tap matrix per channel:
    #   W[c, j, t] = f[c, j - t - OFF]  if 0 <= j - t - OFF < K else 0
    # so that  y[b, c, i*TN + t] = sum_j xd[b, c, i*TN + j] * W[c, j, t].
    taps = time_domain_filter[:, 0, :].astype(jnp.float32)        # (C, K)
    j = jnp.arange(W_LEN)[:, None]
    t = jnp.arange(TN)[None, :]
    idx = j - t - OFF                                              # (W_LEN, TN)
    valid = (idx >= 0) & (idx < K)
    gathered = jnp.take(taps, jnp.clip(idx, 0, K - 1), axis=1)     # (C, W_LEN, TN)
    w_banded = jnp.where(valid[None, :, :], gathered, 0.0)

    out_cbt = pl.pallas_call(
        _whiten_kernel,
        out_shape=jax.ShapeDtypeStruct((C, B, T_out), jnp.float32),
        grid_spec=pltpu.PrefetchScalarGridSpec(
            num_scalar_prefetch=0,
            grid=(C, NI),
            in_specs=[
                # Full time axis of one channel; the block index depends only
                # on c, so it is fetched once per channel and reused across
                # all of that channel's time tiles.
                pl.BlockSpec((None, B, T), lambda c, i: (c, 0, 0)),
                # Per-channel banded tap matrix, reused across time tiles.
                pl.BlockSpec((None, W_LEN, TN), lambda c, i: (c, 0, 0)),
            ],
            out_specs=pl.BlockSpec((None, B, TN), lambda c, i: (c, 0, i)),
        ),
        compiler_params=pltpu.CompilerParams(
            dimension_semantics=("parallel", "parallel")),
    )(x_cbt, w_banded)

    return jnp.transpose(out_cbt, (1, 0, 2))                       # (B, C, T_out)


def preprocessor_reference(x, time_domain_filter, sample_rate, fduration):
    """Pure-JAX reference mirroring the PyTorch forward, for validation."""
    B, C, T = x.shape
    K = time_domain_filter.shape[-1]
    PAD = K // 2
    CROP = int((fduration / 2) * sample_rate)
    xd = x - x.mean(axis=-1, keepdims=True)
    xp = jnp.pad(xd, ((0, 0), (0, 0), (PAD, PAD)))
    out = lax.conv_general_dilated(
        xp, time_domain_filter,
        window_strides=(1,), padding="VALID",
        dimension_numbers=("NCH", "OIH", "NCH"),
        feature_group_count=C,
        precision=lax.Precision.HIGHEST,
    )
    return out[:, :, CROP:T - CROP]


if __name__ == "__main__":
    # Module config, consistent with Preprocessor(num_ifos, sample_rate, fduration)
    num_ifos = 2
    sample_rate = 64.0
    fduration = 1.0
    batch = 2
    seconds = 9
    T = int(seconds * sample_rate)                 # 576 samples
    ntaps = int(fduration * sample_rate) - 1       # 63 (odd), per Whitening __init__

    key = jax.random.PRNGKey(0)
    kx, kf = jax.random.split(key)
    x = jax.random.normal(kx, (batch, num_ifos, T), dtype=jnp.float32)
    # deterministic synthetic whitening filter (normally produced by a .fit()
    # on background PSDs, which is outside forward()).
    time_domain_filter = 0.1 * jax.random.normal(
        kf, (num_ifos, 1, ntaps), dtype=jnp.float32
    )

    out = preprocessor_forward(x, time_domain_filter, sample_rate, fduration)
    out = jax.block_until_ready(out)

    ref = preprocessor_reference(x, time_domain_filter, sample_rate, fduration)
    assert out.shape == ref.shape, (out.shape, ref.shape)
    max_err = float(jnp.max(jnp.abs(out - ref)))
    assert jnp.allclose(out, ref, atol=1e-3, rtol=1e-3), max_err

    print("KERNEL_OK")
</pallas_src>

<mosaic_0001>
module attributes {stable_mosaic.version = 11 : i64} {
  func.func @_whiten_kernel(%arg0: i32, %arg1: i32, %arg2: memref<1x2x576xf32, #tpu.memory_space<vmem>>, %arg3: memref<1x319x256xf32, #tpu.memory_space<vmem>>, %arg4: memref<1x2x256xf32, #tpu.memory_space<vmem>>) attributes {dimension_semantics = [#tpu.dimension_semantics<parallel>, #tpu.dimension_semantics<parallel>], iteration_bounds = array<i64: 2, 2>, scalar_prefetch = 0 : i64, scratch_operands = 0 : i64, tpu.core_type = #tpu.core_type<tc>, window_params = [{transform_indices = @transform_0, window_bounds = array<i64: 1, 2, 576>}, {transform_indices = @transform_1, window_bounds = array<i64: 1, 319, 256>}, {transform_indices = @transform_2, window_bounds = array<i64: 1, 2, 256>}]} {
    %c0 = arith.constant 0 : index
    %c0_0 = arith.constant 0 : index
    %c0_1 = arith.constant 0 : index
    %0 = vector.load %arg2[%c0, %c0_0, %c0_1] : memref<1x2x576xf32, #tpu.memory_space<vmem>>, vector<1x2x576xf32>
    %1 = vector.shape_cast %0 : vector<1x2x576xf32> to vector<2x576xf32>
    %cst = arith.constant dense<0.000000e+00> : vector<2xf32>
    %2 = vector.multi_reduction <add>, %1, %cst [1] : vector<2x576xf32> to vector<2xf32>
    %3 = vector.shape_cast %2 : vector<2xf32> to vector<2x1xf32>
    %cst_2 = arith.constant 5.760000e+02 : f32
    %4 = vector.broadcast %cst_2 : f32 to vector<2x1xf32>
    %5 = arith.divf %3, %4 : vector<2x1xf32>
    %c256_i32 = arith.constant 256 : i32
    %6 = arith.muli %arg1, %c256_i32 : i32
    %7 = tpu.assume_multiple %6, 128 : i32
    %c0_3 = arith.constant 0 : index
    %c0_4 = arith.constant 0 : index
    %8 = arith.index_cast %7 : i32 to index
    %9 = vector.load %arg2[%c0_3, %c0_4, %8] : memref<1x2x576xf32, #tpu.memory_space<vmem>>, vector<1x2x319xf32>
    %10 = vector.shape_cast %9 : vector<1x2x319xf32> to vector<2x319xf32>
    %11 = vector.broadcast %5 : vector<2x1xf32> to vector<2x319xf32>
    %12 = arith.subf %10, %11 : vector<2x319xf32>
    %c0_5 = arith.constant 0 : index
    %c0_6 = arith.constant 0 : index
    %c0_7 = arith.constant 0 : index
    %13 = vector.load %arg3[%c0_5, %c0_6, %c0_7] : memref<1x319x256xf32, #tpu.memory_space<vmem>>, vector<1x319x256xf32>
    %14 = vector.shape_cast %13 : vector<1x319x256xf32> to vector<319x256xf32>
    %cst_8 = arith.constant dense<0.000000e+00> : vector<2x256xf32>
    %15 = tpu.matmul %12, %14, %cst_8 {dimension_numbers = #tpu.dot_dimension_numbers<[1], [0], [0], [1], [0, 0, 1, 1], [], []>} : vector<2x319xf32>, vector<319x256xf32>, vector<2x256xf32> -> vector<2x256xf32>
    %c0_9 = arith.constant 0 : index
    %c0_10 = arith.constant 0 : index
    %c0_11 = arith.constant 0 : index
    %16 = vector.load %arg4[%c0_9, %c0_10, %c0_11] : memref<1x2x256xf32, #tpu.memory_space<vmem>>, vector<1x2x256xf32>
    %17 = vector.shape_cast %16 : vector<1x2x256xf32> to vector<2x256xf32>
    %18 = vector.shape_cast %15 : vector<2x256xf32> to vector<1x2x256xf32>
    tpu.vector_store %arg4[%c0_9, %c0_10, %c0_11], %18 {strides = array<i32>} : memref<1x2x256xf32, #tpu.memory_space<vmem>>, vector<1x2x256xf32>,
    return
  }
  func.func @transform_0(%arg0: i32, %arg1: i32) -> (i32, i32, i32) {
    %c0_i32 = arith.constant 0 : i32
    %c0_i32_0 = arith.constant 0 : i32
    %c0_i32_1 = arith.constant 0 : i32
    return %arg0, %c0_i32, %c0_i32_0 : i32, i32, i32
  }
  func.func @transform_1(%arg0: i32, %arg1: i32) -> (i32, i32, i32) {
    %c0_i32 = arith.constant 0 : i32
    %c0_i32_0 = arith.constant 0 : i32
    %c0_i32_1 = arith.constant 0 : i32
    return %arg0, %c0_i32, %c0_i32_0 : i32, i32, i32
  }
  func.func @transform_2(%arg0: i32, %arg1: i32) -> (i32, i32, i32) {
    %c0_i32 = arith.constant 0 : i32
    %c0_i32_0 = arith.constant 0 : i32
    return %arg0, %c0_i32, %arg1 : i32, i32, i32
  }
}

</mosaic_0001>

<llo_original>
// kernel: tpu_custom_call.1
$region0: #{tpu_custom_call.1}
  #allocation0 [shape = 'u32[]', space=smem, size = 0x4, offset = 0x4, fixed_abs, tag = 'smem constant byte address 0x4 - core index']
  #allocation1 [shape = 'u32[72,128]{1,0:T(1,128)}', space=vmem, size = 0x9000, scoped, tag = 'internal scratch']
  %s0 = inlined_call_operand.vmem [shape: f32[2,2,576], index: 0, kind: input, shape index: {}]
  %s1 = inlined_call_operand.vmem [shape: f32[2,319,256], index: 1, kind: input, shape index: {}]
  %s2 = inlined_call_operand.hbm [shape: f32[2,2,512], index: 2, kind: output, shape index: {}]
  %s3 = sld [smem:[#allocation0]]
  $region41: #{tpu_custom_call.1} parent=0
    _
  %s5 = ssub.s32 1, %s3
  %s6 = scalar_select 0, %s5, %s3
  $region1: #{tpu_custom_call.1} parent=0
    #allocation2 [shape = 'u8[4096]{0}', space=vmem, size = 0x1000, scoped, tag = 'output window, operand 0']
    #allocation3 [shape = 's32[2]{0}', space=sflag, size = 0x8, scoped, tag = 'scoped memory for tpu_custom_call.1']
    %7 = vsyncpa [#allocation3], 0
    %s8 = scalar_lea.sflag [#allocation3], 1
    %9 = vsyncpa %s8, 0
    loop: start=0, step=1, limit=6
    $region2: #{tpu_custom_call.1} parent=1 // loop_pre_header
      _
    $region3: #{tpu_custom_call.1} parent=1 // loop_header
      %s11 = sphi 0, %s15
      %p12 = scmp.ge.s32.totalorder %s11, 6
      %s18 = sphi 0, %s30
      %s19 = sphi 0, %s26
      %s20 = sphi 0, %s18
      %s21 = sphi 0, %s19
      %s22 = sphi 0, %s20
      %s23 = sphi 0, %s21
      %s33 = sphi 0, %s35
      %s36 = sphi 0, %s33
      %s37 = sphi 0, %s36
      %s53 = sphi 0, %s37
      %s59 = sphi 0, %s61
      %s62 = sphi 0, %s59
      %s63 = sphi 0, %s62
      %s79 = sphi 0, %s63
      %s87 = sphi 0, %s89
      %s90 = sphi 0, %s87
      %s91 = sphi 0, %s90
      %s107 = sphi 0, %s91
    $region4: #{tpu_custom_call.1} parent=1 // loop_header_branch
      %14 = sbr.rel (%p12) target = $region8
    $region5: #{tpu_custom_call.1} parent=1 // loop_body
      %s16 = ssub.s32 %s11, 1
      %s17 = ssub.s32 %s11, 2
      %s24 = sadd.s32 1, %s19
      %p25 = scmp.ge.s32.totalorder %s24, 2
      %s26 = scalar_select %p25, 0, %s24
      %s27 = sadd.s32 1, %s18
      %s28 = scalar_select %p25, %s27, %s18
      %p29 = scmp.ge.s32.totalorder %s28, 2
      %s30 = scalar_select %p29, 0, %s28
      %s31 = ssub.s32 %s18, %s30
      %p32 = scmp.eq.s32.totalorder %s31, 0
      %s34 = sadd.s32 %s33, 1
      %s35 = scalar_select %p32, %s33, %s34
      %p38 = pneg %p32
      %p39 = scmp.eq.s32.totalorder %s11, 3
      %p40 = por %p38, %p39
      %p41 = scmp.ne.s32.totalorder %s33, %s36
      %p42 = scmp.eq.s32.totalorder %s11, 0
      %p43 = por %p41, %p42
      %p44 = scmp.ne.s32.totalorder %s33, %s36
      %p45 = scmp.eq.s32.totalorder %s16, 3
      %p46 = por %p44, %p45
      %p47 = scmp.ne.s32.totalorder %s36, %s37
      %p48 = scmp.eq.s32.totalorder %s16, 0
      %p49 = por %p47, %p48
      %p50 = scmp.ne.s32.totalorder %s36, %s37
      %p51 = scmp.eq.s32.totalorder %s17, 3
      %p52 = por %p50, %p51
      %p54 = scmp.ne.s32.totalorder %s37, %s53
      %p55 = scmp.eq.s32.totalorder %s17, 0
      %p56 = por %p54, %p55
      %s57 = ssub.s32 %s18, %s30
      %p58 = scmp.eq.s32.totalorder %s57, 0
      %s60 = sadd.s32 %s59, 1
      %s61 = scalar_select %p58, %s59, %s60
      %p64 = pneg %p58
      %p65 = scmp.eq.s32.totalorder %s11, 3
      %p66 = por %p64, %p65
      %p67 = scmp.ne.s32.totalorder %s59, %s62
      %p68 = scmp.eq.s32.totalorder %s11, 0
      %p69 = por %p67, %p68
      %p70 = scmp.ne.s32.totalorder %s59, %s62
      %p71 = scmp.eq.s32.totalorder %s16, 3
      %p72 = por %p70, %p71
      %p73 = scmp.ne.s32.totalorder %s62, %s63
      %p74 = scmp.eq.s32.totalorder %s16, 0
      %p75 = por %p73, %p74
      %p76 = scmp.ne.s32.totalorder %s62, %s63
      %p77 = scmp.eq.s32.totalorder %s17, 3
      %p78 = por %p76, %p77
      %p80 = scmp.ne.s32.totalorder %s63, %s79
      %p81 = scmp.eq.s32.totalorder %s17, 0
      %p82 = por %p80, %p81
      %s83 = ssub.s32 %s18, %s30
      %s84 = ssub.s32 %s19, %s26
      %s85 = sor.u32 %s83, %s84
      %p86 = scmp.eq.s32.totalorder %s85, 0
      %s88 = sadd.s32 %s87, 1
      %s89 = scalar_select %p86, %s87, %s88
      %p92 = pneg %p86
      %p93 = scmp.eq.s32.totalorder %s11, 3
      %p94 = por %p92, %p93
      %p95 = scmp.ne.s32.totalorder %s87, %s90
      %p96 = scmp.eq.s32.totalorder %s11, 0
      %p97 = por %p95, %p96
      %p98 = scmp.ne.s32.totalorder %s87, %s90
      %p99 = scmp.eq.s32.totalorder %s16, 3
      %p100 = por %p98, %p99
      %p101 = scmp.ne.s32.totalorder %s90, %s91
      %p102 = scmp.eq.s32.totalorder %s16, 0
      %p103 = por %p101, %p102
      %p104 = scmp.ne.s32.totalorder %s90, %s91
      %p105 = scmp.eq.s32.totalorder %s17, 3
      %p106 = por %p104, %p105
      %p108 = scmp.ne.s32.totalorder %s91, %s107
      %p109 = scmp.eq.s32.totalorder %s17, 0
      %p110 = por %p108, %p109
      %p111 = scmp.le.s32.totalorder 1, %s11
      %p112 = scmp.lt.s32.totalorder %s11, 5
      %p113 = pnand %p111, %p112
      %p114 = pneg %p113
      // Predicated region
      $region9: #{tpu_custom_call.1} parent=5 // pred_check
        _
      $region10: #{tpu_custom_call.1} parent=5 // pred_check_branch
        %116 = sbr.rel (%p113) target = $region12
      $region11: #{tpu_custom_call.1} parent=5 // pred_region
        %s117 = ssub.s32 %s11, 1
      $region12: #{tpu_custom_call.1} parent=5 // pred_fallthru
        _
      %p118 = scmp.lt.s32.totalorder %s11, 4
      // Predicated region
      $region13: #{tpu_custom_call.1} parent=5 // pred_check
        %p119 = pneg %p118
      $region14: #{tpu_custom_call.1} parent=5 // pred_check_branch
        %121 = sbr.rel (%p119) target = $region16
      $region15: #{tpu_custom_call.1} parent=5 // pred_region
        // Predicated region
        $region17: #{tpu_custom_call.1} parent=15 // pred_check
          %p122 = pneg %p43
        $region18: #{tpu_custom_call.1} parent=15 // pred_check_branch
          %124 = sbr.rel (%p122) target = $region20
        $region19: #{tpu_custom_call.1} parent=15 // pred_region
          %p125 = scmp.lt.s32.totalorder %s18, 1
          %s126 = scalar_select %p125, %s18, 1
          %s127 = smul.addr %s126, 5
          %s128 = smul.addr %s127, 2
          %s129 = scalar_lea.vmem %s0, %s128
        $region20: #{tpu_custom_call.1} parent=15 // pred_fallthru
          _
        // Predicated region
        $region21: #{tpu_custom_call.1} parent=15 // pred_check
          %p130 = pneg %p69
        $region22: #{tpu_custom_call.1} parent=15 // pred_check_branch
          %132 = sbr.rel (%p130) target = $region24
        $region23: #{tpu_custom_call.1} parent=15 // pred_region
          %p133 = scmp.lt.s32.totalorder %s18, 1
          %s134 = scalar_select %p133, %s18, 1
          %s135 = smul.addr %s134, 80
          %s136 = smul.addr %s135, 8
          %s137 = scalar_lea.vmem %s1, %s136
        $region24: #{tpu_custom_call.1} parent=15 // pred_fallthru
          _
      $region16: #{tpu_custom_call.1} parent=5 // pred_fallthru
        _
      %p138 = scmp.le.s32.totalorder 1, %s11
      %p139 = scmp.lt.s32.totalorder %s11, 5
      %p140 = pnand %p138, %p139
      %p141 = pneg %p140
      // Predicated region
      $region25: #{tpu_custom_call.1} parent=5 // pred_check
        _
      $region26: #{tpu_custom_call.1} parent=5 // pred_check_branch
        %143 = sbr.rel (%p140) target = $region28
      $region27: #{tpu_custom_call.1} parent=5 // pred_region
        %s144 = ssub.s32 %s11, 1
        %p145 = scmp.lt.s32.totalorder %s20, 1
        %s146 = scalar_select %p145, %s20, 1
        %s147 = smul.addr %s146, 5
        %s148 = smul.addr %s147, 2
        %s149 = scalar_lea.vmem %s0, %s148
        %p150 = pneg %p49
        %p151 = pneg %p46
        %p152 = scmp.lt.s32.totalorder %s20, 1
        %s153 = scalar_select %p152, %s20, 1
        %s154 = smul.addr %s153, 80
        %s155 = smul.addr %s154, 8
        %s156 = scalar_lea.vmem %s1, %s155
        %p157 = pneg %p75
        %p158 = pneg %p72
        %p159 = pneg %p103
        %p160 = pneg %p100
        %s161 = sand.u32 %s90, 1
        %s162 = scalar_lea.sflag [#allocation3], %s161
        %s163 = sand.u32 %s90, 1
        %s164 = smul.addr %s163, 4
        %s165 = scalar_lea.vmem [#allocation2], %s164
        %p166 = scmp.lt.s32.totalorder %s20, 1
        %s167 = scalar_select %p166, %s20, 1
        %s168 = smul.addr %s167, 5
        %s169 = smul.addr %s168, 2
        %s170 = scalar_lea.vmem %s0, %s169
        %p171 = scmp.lt.s32.totalorder %s20, 1
        %s172 = scalar_select %p171, %s20, 1
        %s173 = smul.addr %s172, 80
        %s174 = smul.addr %s173, 8
        %s175 = scalar_lea.vmem %s1, %s174
        %s176 = smul.u32 2, %s21
        %v177 = vld [vmem:[%s170] sm:$0xff]
        %v178 = vld [vmem:[%s170 + $0x8] sm:$0x3]
        %181 = vst [vmem:[#allocation1] ss:$4 sm:$0xff] %v177
        %s182 = scalar_lea.vmem [#allocation1], 32
        %183 = vst [vmem:[%s182] ss:$4 sm:$0xff] %v178
        %v184 = vld.sshfl [vmem:[#allocation1] sm:$0xff pattern:$0x73625140]
        %v185 = vld.sshfl [vmem:[#allocation1 + $0x8] sm:$0xff pattern:$0x73625140]
        %v186 = vld.sshfl [vmem:[#allocation1 + $0x10] sm:$0xff pattern:$0x73625140]
        %v187 = vld.sshfl [vmem:[#allocation1 + $0x18] sm:$0xff pattern:$0x73625140]
        %v188 = vld.sshfl [vmem:[#allocation1 + $0x20] sm:$0xff pattern:$0x73625140]
        %vm194 = vcmask 1041408
        %v195 = vsel %vm194, %v184, 0.0
        %v196 = vsel %vm194, %v185, 0.0
        %v197 = vadd.f32 %v195, %v196
        %v198 = vsel %vm194, %v186, 0.0
        %v199 = vadd.f32 %v197, %v198
        %v200 = vsel %vm194, %v187, 0.0
        %v201 = vadd.f32 %v199, %v200
        %vm202 = vcmask 517120
        %v203 = vsel %vm202, %v188, 0.0
        %v204 = vadd.f32 %v201, %v203
        %205 = vadd.xlane.f32.xlu0 %v204
        %v206 = vpop.xlane.xlu0 %205
        %v207 = vrcp.pop 576.0
        %v208 = vmul.f32 576.0, %v207
        %v209 = vsub.f32 1.0, %v208
        %v210 = vmul.f32 %v207, %v209
        %v211 = vadd.f32 %v207, %v210
        %vm212 = vweird.f32 %v207
        %v213 = vsel %vm212, %v207, %v211
        %v214 = vmul.f32 %v206, %v213
        %s215 = smul.u32 %s21, 256
        %s216 = sshra.s32 %s215, 7
        %s217 = sand.u32 %s215, 127
        %s218 = smul.addr %s216, 2
        %s219 = scalar_lea.vmem %s170, %s218
        %v220 = vld [vmem:[%s219] sm:$0x3f]
        %v223 = vunpack.c.l.s4 269488144
        %v224 = vunpack.c.0.s8 %v223
        %v225 = vperm.slane %v214, %v224
        %v227 = vsub.f32 %v220, %v225
        %v228 = vld [vmem:[%s175] sm:$0xff]
        %v229 = vld [vmem:[%s175 + $0x8] sm:$0xff]
        %v230 = vld [vmem:[%s175 + $0x10] sm:$0xff]
        %v231 = vld [vmem:[%s175 + $0x18] sm:$0xff]
        %v232 = vld [vmem:[%s175 + $0x20] sm:$0xff]
        %v233 = vld [vmem:[%s175 + $0x28] sm:$0xff]
        %v234 = vld [vmem:[%s175 + $0x30] sm:$0xff]
        %v235 = vld [vmem:[%s175 + $0x38] sm:$0xff]
        %v236 = vld [vmem:[%s175 + $0x40] sm:$0xff]
        %v237 = vld [vmem:[%s175 + $0x48] sm:$0xff]
        %v238 = vld [vmem:[%s175 + $0x50] sm:$0xff]
        %v239 = vld [vmem:[%s175 + $0x58] sm:$0xff]
        %v240 = vld [vmem:[%s175 + $0x60] sm:$0xff]
        %v241 = vld [vmem:[%s175 + $0x68] sm:$0xff]
        %v242 = vld [vmem:[%s175 + $0x70] sm:$0xff]
        %v243 = vld [vmem:[%s175 + $0x78] sm:$0xff]
        %v244 = vld [vmem:[%s175 + $0x80] sm:$0xff]
        %v245 = vld [vmem:[%s175 + $0x88] sm:$0xff]
        %v246 = vld [vmem:[%s175 + $0x90] sm:$0xff]
        %v247 = vld [vmem:[%s175 + $0x98] sm:$0xff]
        %v248 = vld [vmem:[%s175 + $0xa0] sm:$0xff]
        %v249 = vld [vmem:[%s175 + $0xa8] sm:$0xff]
        %v250 = vld [vmem:[%s175 + $0xb0] sm:$0xff]
        %v251 = vld [vmem:[%s175 + $0xb8] sm:$0xff]
        %v252 = vld [vmem:[%s175 + $0xc0] sm:$0xff]
        %v253 = vld [vmem:[%s175 + $0xc8] sm:$0xff]
        %v254 = vld [vmem:[%s175 + $0xd0] sm:$0xff]
        %v255 = vld [vmem:[%s175 + $0xd8] sm:$0xff]
        %v256 = vld [vmem:[%s175 + $0xe0] sm:$0xff]
        %v257 = vld [vmem:[%s175 + $0xe8] sm:$0xff]
        %v258 = vld [vmem:[%s175 + $0xf0] sm:$0xff]
        %v259 = vld [vmem:[%s175 + $0xf8] sm:$0xff]
        %v260 = vld [vmem:[%s175 + $0x100] sm:$0xff]
        %v261 = vld [vmem:[%s175 + $0x108] sm:$0xff]
        %v262 = vld [vmem:[%s175 + $0x110] sm:$0xff]
        %v263 = vld [vmem:[%s175 + $0x118] sm:$0xff]
        %v264 = vld [vmem:[%s175 + $0x120] sm:$0xff]
        %v265 = vld [vmem:[%s175 + $0x128] sm:$0xff]
        %v266 = vld [vmem:[%s175 + $0x130] sm:$0xff]
        %v267 = vld [vmem:[%s175 + $0x138] sm:$0xff]
        %v268 = vld [vmem:[%s175 + $0x140] sm:$0xff]
        %v269 = vld [vmem:[%s175 + $0x148] sm:$0xff]
        %v270 = vld [vmem:[%s175 + $0x150] sm:$0xff]
        %v271 = vld [vmem:[%s175 + $0x158] sm:$0xff]
        %v272 = vld [vmem:[%s175 + $0x160] sm:$0xff]
        %v273 = vld [vmem:[%s175 + $0x168] sm:$0xff]
        %v274 = vld [vmem:[%s175 + $0x170] sm:$0xff]
        %v275 = vld [vmem:[%s175 + $0x178] sm:$0xff]
        %v276 = vld [vmem:[%s175 + $0x180] sm:$0xff]
        %v277 = vld [vmem:[%s175 + $0x188] sm:$0xff]
        %v278 = vld [vmem:[%s175 + $0x190] sm:$0xff]
        %v279 = vld [vmem:[%s175 + $0x198] sm:$0xff]
        %v280 = vld [vmem:[%s175 + $0x1a0] sm:$0xff]
        %v281 = vld [vmem:[%s175 + $0x1a8] sm:$0xff]
        %v282 = vld [vmem:[%s175 + $0x1b0] sm:$0xff]
        %v283 = vld [vmem:[%s175 + $0x1b8] sm:$0xff]
        %v284 = vld [vmem:[%s175 + $0x1c0] sm:$0xff]
        %v285 = vld [vmem:[%s175 + $0x1c8] sm:$0xff]
        %v286 = vld [vmem:[%s175 + $0x1d0] sm:$0xff]
        %v287 = vld [vmem:[%s175 + $0x1d8] sm:$0xff]
        %v288 = vld [vmem:[%s175 + $0x1e0] sm:$0xff]
        %v289 = vld [vmem:[%s175 + $0x1e8] sm:$0xff]
        %v290 = vld [vmem:[%s175 + $0x1f0] sm:$0xff]
        %v291 = vld [vmem:[%s175 + $0x1f8] sm:$0xff]
        %v292 = vld [vmem:[%s175 + $0x200] sm:$0xff]
        %v293 = vld [vmem:[%s175 + $0x208] sm:$0xff]
        %v294 = vld [vmem:[%s175 + $0x210] sm:$0xff]
        %v295 = vld [vmem:[%s175 + $0x218] sm:$0xff]
        %v296 = vld [vmem:[%s175 + $0x220] sm:$0xff]
        %v297 = vld [vmem:[%s175 + $0x228] sm:$0xff]
        %v298 = vld [vmem:[%s175 + $0x230] sm:$0xff]
        %v299 = vld [vmem:[%s175 + $0x238] sm:$0xff]
        %v300 = vld [vmem:[%s175 + $0x240] sm:$0xff]
        %v301 = vld [vmem:[%s175 + $0x248] sm:$0xff]
        %v302 = vld [vmem:[%s175 + $0x250] sm:$0xff]
        %v303 = vld [vmem:[%s175 + $0x258] sm:$0xff]
        %v304 = vld [vmem:[%s175 + $0x260] sm:$0xff]
        %v305 = vld [vmem:[%s175 + $0x268] sm:$0xff]
        %v306 = vld [vmem:[%s175 + $0x270] sm:$0x7f]
        %v307 = vld [vmem:[%s175 + $0x278] sm:$0x7f]
        %309 = vst [vmem:[#allocation1] ss:$4 sm:$0xff] %v227
        %v310 = vld.sshfl [vmem:[#allocation1] sm:$0xff pattern:$0x73625140]
        %v311 = vld.sshfl [vmem:[#allocation1 + $0x8] sm:$0xff pattern:$0x73625140]
        %v312 = vld.sshfl [vmem:[#allocation1 + $0x10] sm:$0xff pattern:$0x73625140]
        %vm315 = vcmask 515072
        %v316 = vsel %vm315, %v312, 0
        %vm318 = vcmask 1046528
        %v320 = vsel %vm318, %v306, 0
        %v323 = vsel %vm318, %v307, 0
        %325 = vmatpush.msra.mxu0 %v258
        %326 = vmatpush.msra.mxu0 %v256
        %327 = vmatpush.msra.mxu0 %v254
        %328 = vmatpush.msra.mxu0 %v252
        %329 = vmatpush.msra.mxu0 %v250
        %330 = vmatpush.msra.mxu0 %v248
        %331 = vmatpush.msra.mxu0 %v246
        %332 = vmatpush.msra.mxu0 %v244
        %333 = vmatpush.msra.mxu0 %v242
        %334 = vmatpush.msra.mxu0 %v240
        %335 = vmatpush.msra.mxu0 %v238
        %336 = vmatpush.msra.mxu0 %v236
        %337 = vmatpush.msra.mxu0 %v234
        %338 = vmatpush.msra.mxu0 %v232
        %339 = vmatpush.msra.mxu0 %v230
        %340 = vmatpush.msra.mxu0 %v228
        %341 = vmatmul.f32.gmra.mxu0 %v310
        %v342 = vpop.f32.mrf.mxu0
        %v343 = vadd.f32 0.0, %v342
        %344 = vdwg.mxu0
        %345 = vmatpush.msra.mxu0 %v290
        %346 = vmatpush.msra.mxu0 %v288
        %347 = vmatpush.msra.mxu0 %v286
        %348 = vmatpush.msra.mxu0 %v284
        %349 = vmatpush.msra.mxu0 %v282
        %350 = vmatpush.msra.mxu0 %v280
        %351 = vmatpush.msra.mxu0 %v278
        %352 = vmatpush.msra.mxu0 %v276
        %353 = vmatpush.msra.mxu0 %v274
        %354 = vmatpush.msra.mxu0 %v272
        %355 = vmatpush.msra.mxu0 %v270
        %356 = vmatpush.msra.mxu0 %v268
        %357 = vmatpush.msra.mxu0 %v266
        %358 = vmatpush.msra.mxu0 %v264
        %359 = vmatpush.msra.mxu0 %v262
        %360 = vmatpush.msra.mxu0 %v260
        %361 = vmatmul.f32.gmra.mxu0 %v311
        %v362 = vpop.f32.mrf.mxu0
        %v363 = vadd.f32 %v343, %v362
        %364 = vdwg.mxu0
        %365 = vmatpush.msra.mxu0 0.0
        %366 = vmatpush.msra.mxu0 0.0
        %367 = vmatpush.msra.mxu0 0.0
        %368 = vmatpush.msra.mxu0 0.0
        %369 = vmatpush.msra.mxu0 0.0
        %370 = vmatpush.msra.mxu0 0.0
        %371 = vmatpush.msra.mxu0 0.0
        %372 = vmatpush.msra.mxu0 0.0
        %373 = vmatpush.msra.mxu0 %v320
        %374 = vmatpush.msra.mxu0 %v304
        %375 = vmatpush.msra.mxu0 %v302
        %376 = vmatpush.msra.mxu0 %v300
        %377 = vmatpush.msra.mxu0 %v298
        %378 = vmatpush.msra.mxu0 %v296
        %379 = vmatpush.msra.mxu0 %v294
        %380 = vmatpush.msra.mxu0 %v292
        %381 = vmatmul.f32.gmra.mxu0 %v316
        %v382 = vpop.f32.mrf.mxu0
        %v383 = vadd.f32 %v363, %v382
        %384 = vdwg.mxu0
        %385 = vmatpush.msra.mxu0 %v259
        %386 = vmatpush.msra.mxu0 %v257
        %387 = vmatpush.msra.mxu0 %v255
        %388 = vmatpush.msra.mxu0 %v253
        %389 = vmatpush.msra.mxu0 %v251
        %390 = vmatpush.msra.mxu0 %v249
        %391 = vmatpush.msra.mxu0 %v247
        %392 = vmatpush.msra.mxu0 %v245
        %393 = vmatpush.msra.mxu0 %v243
        %394 = vmatpush.msra.mxu0 %v241
        %395 = vmatpush.msra.mxu0 %v239
        %396 = vmatpush.msra.mxu0 %v237
        %397 = vmatpush.msra.mxu0 %v235
        %398 = vmatpush.msra.mxu0 %v233
        %399 = vmatpush.msra.mxu0 %v231
        %400 = vmatpush.msra.mxu0 %v229
        %401 = vmatmul.f32.gmra.mxu0 %v310
        %v402 = vpop.f32.mrf.mxu0
        %v403 = vadd.f32 0.0, %v402
        %404 = vdwg.mxu0
        %405 = vmatpush.msra.mxu0 %v291
        %406 = vmatpush.msra.mxu0 %v289
        %407 = vmatpush.msra.mxu0 %v287
        %408 = vmatpush.msra.mxu0 %v285
        %409 = vmatpush.msra.mxu0 %v283
        %410 = vmatpush.msra.mxu0 %v281
        %411 = vmatpush.msra.mxu0 %v279
        %412 = vmatpush.msra.mxu0 %v277
        %413 = vmatpush.msra.mxu0 %v275
        %414 = vmatpush.msra.mxu0 %v273
        %415 = vmatpush.msra.mxu0 %v271
        %416 = vmatpush.msra.mxu0 %v269
        %417 = vmatpush.msra.mxu0 %v267
        %418 = vmatpush.msra.mxu0 %v265
        %419 = vmatpush.msra.mxu0 %v263
        %420 = vmatpush.msra.mxu0 %v261
        %421 = vmatmul.f32.gmra.mxu0 %v311
        %v422 = vpop.f32.mrf.mxu0
        %v423 = vadd.f32 %v403, %v422
        %424 = vdwg.mxu0
        %425 = vmatpush.msra.mxu0 0.0
        %426 = vmatpush.msra.mxu0 0.0
        %427 = vmatpush.msra.mxu0 0.0
        %428 = vmatpush.msra.mxu0 0.0
        %429 = vmatpush.msra.mxu0 0.0
        %430 = vmatpush.msra.mxu0 0.0
        %431 = vmatpush.msra.mxu0 0.0
        %432 = vmatpush.msra.mxu0 0.0
        %433 = vmatpush.msra.mxu0 %v323
        %434 = vmatpush.msra.mxu0 %v305
        %435 = vmatpush.msra.mxu0 %v303
        %436 = vmatpush.msra.mxu0 %v301
        %437 = vmatpush.msra.mxu0 %v299
        %438 = vmatpush.msra.mxu0 %v297
        %439 = vmatpush.msra.mxu0 %v295
        %440 = vmatpush.msra.mxu0 %v293
        %441 = vmatmul.f32.gmra.mxu0 %v316
        %v442 = vpop.f32.mrf.mxu0
        %v443 = vadd.f32 %v423, %v442
        %444 = vdwg.mxu0
        %v447 = vrot.slane %v443, 6
        %v448 = vsel %vm194, %v383, %v447
        %450 = vst [vmem:[%s165] sm:$0xf] %v448
        %s451 = sand.u32 %s90, 1
        %s452 = scalar_lea.sflag [#allocation3], %s451
        %s453 = sand.u32 %s90, 1
        %s454 = smul.addr %s453, 4
        %s455 = scalar_lea.vmem [#allocation2], %s454
        // Predicated region
        $region29: #{tpu_custom_call.1} parent=27 // pred_check
          %p456 = pneg %p100
        $region30: #{tpu_custom_call.1} parent=27 // pred_check_branch
          %458 = sbr.rel (%p456) target = $region32
        $region31: #{tpu_custom_call.1} parent=27 // pred_region
          %s459 = smul.u32 2, %s21
          %461 = vsyncadd %s452, 0
          %s462 = smul.addr %s20, 4
          %s463 = sadd.s32 %s459, %s462
          %s464 = smul.addr %s463, 2
          %s465 = scalar_lea.hbm %s2, %s464
          %s467 = sshll.u32 %s455, 4
          %s468 = int_to_ptr.vmem [resolvable:$true] %s467
          %s469 = sshll.u32 %s465, 4
          %s470 = int_to_ptr.hbm [resolvable:$true] %s469
          %472 = dma.vmem_to_hbm [thread:$0]  %s468, 64, %s470, %s452
        $region32: #{tpu_custom_call.1} parent=27 // pred_fallthru
          _
      $region28: #{tpu_custom_call.1} parent=5 // pred_fallthru
        _
      %p473 = scmp.le.s32.totalorder 2, %s11
      // Predicated region
      $region33: #{tpu_custom_call.1} parent=5 // pred_check
        %p474 = pneg %p473
      $region34: #{tpu_custom_call.1} parent=5 // pred_check_branch
        %476 = sbr.rel (%p474) target = $region36
      $region35: #{tpu_custom_call.1} parent=5 // pred_region
        %s477 = ssub.s32 %s11, 2
        // Predicated region
        $region37: #{tpu_custom_call.1} parent=35 // pred_check
          %p478 = pneg %p106
        $region38: #{tpu_custom_call.1} parent=35 // pred_check_branch
          %480 = sbr.rel (%p478) target = $region40
        $region39: #{tpu_custom_call.1} parent=35 // pred_region
          %s481 = sand.u32 %s91, 1
          %s482 = scalar_lea.sflag [#allocation3], %s481
          %s483 = sand.u32 %s91, 1
          %s484 = smul.addr %s483, 4
          %s485 = scalar_lea.vmem [#allocation2], %s484
          %487 = dma.done %s482, 64
        $region40: #{tpu_custom_call.1} parent=35 // pred_fallthru
          _
      $region36: #{tpu_custom_call.1} parent=5 // pred_fallthru
        _
    $region6: #{tpu_custom_call.1} parent=1 // loop_footer
      %s15 = sadd.s32 1, %s11
    $region7: #{tpu_custom_call.1} parent=1 // loop_footer_branch
      %10 = sbr.rel target = $region3
    $region8: #{tpu_custom_call.1} parent=1 // loop_exit
      _
    %488 = vsyncpa [#allocation3], 1
    %s489 = scalar_lea.sflag [#allocation3], 1
    %490 = vsyncpa %s489, 1

</llo_original>
